<compile_context>
chip_gen: v5e
topology: v5e:2x2
jax: 0.10.0
libtpu: 0.0.40
codegen_flags: <defaults>
</compile_context>

<pallas_src>
import jax
import jax.numpy as jnp
from jax.experimental import pallas as pl
from jax.experimental.pallas import tpu as pltpu


HIDDEN_DIMS = (128, 64, 32, 16, 32, 64, 128)  # interior layer widths
NUM_LAYERS = 8
MAX_TILE_B = 1024


def _round_up(x, m):
    return ((x + m - 1) // m) * m


def _cdiv(a, b):
    return (a + b - 1) // b


def autoencoder_kernel(x_ref, w1, w2, w3, w4, w5, w6, w7, w8, b_ref, out_ref):
    """Fused 8-layer MLP over one (TILE_B, D_pad) batch tile.

    x_ref  : (TILE_B, D_pad) f32 activation tile (cast to bf16 in-kernel)
    w1..w8 : bf16 weights stored (in_features_pad, out_features_pad), zero-padded
    b_ref  : (8, D_pad) f32 packed biases, row j = bias of layer j (zero-padded)
    out_ref: (TILE_B, D_pad) bf16 (or caller-chosen dtype)
    """
    w_refs = (w1, w2, w3, w4, w5, w6, w7, w8)
    h = x_ref[...].astype(jnp.bfloat16)               # f32 -> bf16 cast in VMEM
    for j, w in enumerate(w_refs):
        out_dim = w.shape[1]
        # bf16 x bf16 -> f32 accumulate on the MXU
        y = jnp.dot(h, w[...], preferred_element_type=jnp.float32)
        y = y + b_ref[j : j + 1, :out_dim]            # f32 bias (broadcast rows)
        if j < NUM_LAYERS - 1:
            h = jnp.maximum(y, 0.0).astype(jnp.bfloat16)   # ReLU (f32) -> bf16
        else:
            out_ref[...] = y.astype(out_ref.dtype)         # last layer: no ReLU


def build_params(input_dim, key):
    """PyTorch-style uniform init; weights stored (in_features, out_features)."""
    dims = [input_dim] + list(HIDDEN_DIMS) + [input_dim]
    params = []
    for i in range(NUM_LAYERS):
        fan_in, fan_out = dims[i], dims[i + 1]
        key, kw, kb = jax.random.split(key, 3)
        bound = 1.0 / jnp.sqrt(jnp.float32(fan_in))
        w = jax.random.uniform(kw, (fan_in, fan_out), jnp.float32, -bound, bound)
        b = jax.random.uniform(kb, (fan_out,), jnp.float32, -bound, bound)
        params.append((w, b))
    return params


def autoencoder_forward(x, params, *, out_dtype=jnp.bfloat16, max_tile_b=MAX_TILE_B):
    """x: (B, ...) flattened to (B, input_dim), like x.view(x.size(0), -1)."""
    B = x.shape[0]
    x2d = x.reshape(B, -1)
    if x2d.dtype != jnp.float32:
        x2d = x2d.astype(jnp.float32)
    D = x2d.shape[1]
    D_pad = max(_round_up(D, 128), 128)

    dims = [D] + list(HIDDEN_DIMS) + [D]
    # Interior widths padded to 128 -> lane-dense activations everywhere.
    dims_pad = [D_pad] + [128] * len(HIDDEN_DIMS) + [D_pad]

    # Pre-cast / pre-pad weights once in HBM (bf16 MXU operands).
    ws = []
    for j, (w, _) in enumerate(params):
        w_p = jnp.zeros((dims_pad[j], dims_pad[j + 1]), jnp.float32)
        w_p = w_p.at[: dims[j], : dims[j + 1]].set(w)
        ws.append(w_p.astype(jnp.bfloat16))

    # Pack all 8 biases into one (8, D_pad) f32 buffer (one DMA instead of 8).
    b_packed = jnp.zeros((NUM_LAYERS, D_pad), jnp.float32)
    for j, (_, b) in enumerate(params):
        b_packed = b_packed.at[j, : dims[j + 1]].set(b)

    # Batch tiling: bound padding waste (tile derived from #tiles, not the
    # other way around) and keep >= 2 grid steps when B >= 16 so the
    # "parallel" batch axis shards across both TensorCores on v7x.
    num_tiles = _cdiv(B, max_tile_b)
    if B >= 16:
        num_tiles = max(num_tiles, 2)
    tile_b = _round_up(_cdiv(B, num_tiles), 8)
    B_pad = tile_b * num_tiles

    if (B_pad, D_pad) != (B, D):
        x_p = jnp.zeros((B_pad, D_pad), x2d.dtype).at[:B, :D].set(x2d)
    else:
        x_p = x2d  # aligned case: no wrapper pad/cast pass at all

    in_specs = [pl.BlockSpec((tile_b, D_pad), lambda i: (i, 0))]
    for w in ws:
        # constant index map -> weights stay VMEM-resident across grid steps
        in_specs.append(pl.BlockSpec(w.shape, lambda i: (0, 0)))
    in_specs.append(pl.BlockSpec(b_packed.shape, lambda i: (0, 0)))

    out_itemsize = jnp.dtype(out_dtype).itemsize
    flops = 2 * B_pad * sum(dims_pad[j] * dims_pad[j + 1] for j in range(NUM_LAYERS))
    bytes_accessed = (
        B_pad * D_pad * x_p.dtype.itemsize          # activation read
        + sum(int(w.size) * 2 for w in ws)          # bf16 weights
        + int(b_packed.size) * 4                    # f32 biases
        + B_pad * D_pad * out_itemsize              # output writeback
    )
    cost = pl.CostEstimate(
        flops=flops, transcendentals=0, bytes_accessed=bytes_accessed)

    out_p = pl.pallas_call(
        autoencoder_kernel,
        out_shape=jax.ShapeDtypeStruct((B_pad, D_pad), out_dtype),
        grid=(num_tiles,),
        in_specs=in_specs,
        out_specs=pl.BlockSpec((tile_b, D_pad), lambda i: (i, 0)),
        compiler_params=pltpu.CompilerParams(
            dimension_semantics=("parallel",)),
        cost_estimate=cost,
    )(x_p, *ws, b_packed)

    if (B_pad, D_pad) != (B, D):
        out_p = out_p[:B, :D]
    return out_p


def reference_forward(x, params):
    """Pure-JAX reference using the same bf16-operand / f32-accumulate math."""
    B = x.shape[0]
    h = x.reshape(B, -1).astype(jnp.float32)
    for i, (w, b) in enumerate(params):
        h = jnp.dot(h.astype(jnp.bfloat16), w.astype(jnp.bfloat16),
                    preferred_element_type=jnp.float32) + b.reshape(1, -1)
        if i < NUM_LAYERS - 1:
            h = jnp.maximum(h, 0.0)
    return h


if __name__ == "__main__":
    key = jax.random.PRNGKey(0)
    kx, kp = jax.random.split(key)

    # small demo shapes: batch=8, image 16x16 -> input_dim = 256
    B, H, W = 8, 16, 16
    x = jax.random.normal(kx, (B, H, W), jnp.float32)
    params = build_params(H * W, kp)

    out = jax.block_until_ready(autoencoder_forward(x, params))
    ref = reference_forward(x, params)

    assert out.shape == (B, H * W)
    out_f32 = out.astype(jnp.float32)
    max_diff = float(jnp.max(jnp.abs(out_f32 - ref)))
    # bf16 output vs f32 reference -> relaxed tolerance
    assert jnp.allclose(out_f32, ref, atol=3e-2, rtol=3e-2), max_diff

    print("KERNEL_OK")
</pallas_src>

<mosaic_0001>
module attributes {stable_mosaic.version = 11 : i64} {
  func.func @autoencoder_kernel(%arg0: i32, %arg1: memref<8x256xf32, #tpu.memory_space<vmem>>, %arg2: memref<256x128xbf16, #tpu.memory_space<vmem>>, %arg3: memref<128x128xbf16, #tpu.memory_space<vmem>>, %arg4: memref<128x128xbf16, #tpu.memory_space<vmem>>, %arg5: memref<128x128xbf16, #tpu.memory_space<vmem>>, %arg6: memref<128x128xbf16, #tpu.memory_space<vmem>>, %arg7: memref<128x128xbf16, #tpu.memory_space<vmem>>, %arg8: memref<128x128xbf16, #tpu.memory_space<vmem>>, %arg9: memref<128x256xbf16, #tpu.memory_space<vmem>>, %arg10: memref<8x256xf32, #tpu.memory_space<vmem>>, %arg11: memref<8x256xbf16, #tpu.memory_space<vmem>>) attributes {dimension_semantics = [#tpu.dimension_semantics<parallel>], iteration_bounds = array<i64: 1>, scalar_prefetch = 0 : i64, scratch_operands = 0 : i64, tpu.core_type = #tpu.core_type<tc>, window_params = [{transform_indices = @transform_0, window_bounds = array<i64: 8, 256>}, {pipeline_mode = #tpu.pipeline_mode<synchronous>, transform_indices = @transform_1, window_bounds = array<i64: 256, 128>}, {pipeline_mode = #tpu.pipeline_mode<synchronous>, transform_indices = @transform_2, window_bounds = array<i64: 128, 128>}, {pipeline_mode = #tpu.pipeline_mode<synchronous>, transform_indices = @transform_3, window_bounds = array<i64: 128, 128>}, {pipeline_mode = #tpu.pipeline_mode<synchronous>, transform_indices = @transform_4, window_bounds = array<i64: 128, 128>}, {pipeline_mode = #tpu.pipeline_mode<synchronous>, transform_indices = @transform_5, window_bounds = array<i64: 128, 128>}, {pipeline_mode = #tpu.pipeline_mode<synchronous>, transform_indices = @transform_6, window_bounds = array<i64: 128, 128>}, {pipeline_mode = #tpu.pipeline_mode<synchronous>, transform_indices = @transform_7, window_bounds = array<i64: 128, 128>}, {pipeline_mode = #tpu.pipeline_mode<synchronous>, transform_indices = @transform_8, window_bounds = array<i64: 128, 256>}, {pipeline_mode = #tpu.pipeline_mode<synchronous>, transform_indices = @transform_9, window_bounds = array<i64: 8, 256>}, {transform_indices = @transform_10, window_bounds = array<i64: 8, 256>}]} {
    %c0 = arith.constant 0 : index
    %c0_0 = arith.constant 0 : index
    %0 = vector.load %arg1[%c0, %c0_0] : memref<8x256xf32, #tpu.memory_space<vmem>>, vector<8x256xf32>
    %1 = arith.truncf %0 : vector<8x256xf32> to vector<8x256xbf16>
    %c0_1 = arith.constant 0 : index
    %c0_2 = arith.constant 0 : index
    %2 = vector.load %arg2[%c0_1, %c0_2] : memref<256x128xbf16, #tpu.memory_space<vmem>>, vector<256x128xbf16>
    %cst = arith.constant dense<0.000000e+00> : vector<8x128xf32>
    %3 = tpu.matmul %1, %2, %cst {dimension_numbers = #tpu.dot_dimension_numbers<[1], [0], [0], [1], [0, 0, 1, 1], [], []>} : vector<8x256xbf16>, vector<256x128xbf16>, vector<8x128xf32> -> vector<8x128xf32>
    %c0_3 = arith.constant 0 : index
    %c0_4 = arith.constant 0 : index
    %4 = vector.load %arg10[%c0_3, %c0_4] : memref<8x256xf32, #tpu.memory_space<vmem>>, vector<1x128xf32>
    %5 = vector.broadcast %4 : vector<1x128xf32> to vector<8x128xf32>
    %6 = arith.addf %3, %5 : vector<8x128xf32>
    %cst_5 = arith.constant 0.000000e+00 : f32
    %7 = vector.broadcast %cst_5 : f32 to vector<8x128xf32>
    %8 = arith.maximumf %6, %7 : vector<8x128xf32>
    %9 = arith.truncf %8 : vector<8x128xf32> to vector<8x128xbf16>
    %c0_6 = arith.constant 0 : index
    %c0_7 = arith.constant 0 : index
    %10 = vector.load %arg3[%c0_6, %c0_7] : memref<128x128xbf16, #tpu.memory_space<vmem>>, vector<128x128xbf16>
    %cst_8 = arith.constant dense<0.000000e+00> : vector<8x128xf32>
    %11 = tpu.matmul %9, %10, %cst_8 {dimension_numbers = #tpu.dot_dimension_numbers<[1], [0], [0], [1], [0, 0, 1, 1], [], []>} : vector<8x128xbf16>, vector<128x128xbf16>, vector<8x128xf32> -> vector<8x128xf32>
    %c1 = arith.constant 1 : index
    %c0_9 = arith.constant 0 : index
    %12 = vector.load %arg10[%c1, %c0_9] : memref<8x256xf32, #tpu.memory_space<vmem>>, vector<1x128xf32>
    %13 = vector.broadcast %12 : vector<1x128xf32> to vector<8x128xf32>
    %14 = arith.addf %11, %13 : vector<8x128xf32>
    %cst_10 = arith.constant 0.000000e+00 : f32
    %15 = vector.broadcast %cst_10 : f32 to vector<8x128xf32>
    %16 = arith.maximumf %14, %15 : vector<8x128xf32>
    %17 = arith.truncf %16 : vector<8x128xf32> to vector<8x128xbf16>
    %c0_11 = arith.constant 0 : index
    %c0_12 = arith.constant 0 : index
    %18 = vector.load %arg4[%c0_11, %c0_12] : memref<128x128xbf16, #tpu.memory_space<vmem>>, vector<128x128xbf16>
    %cst_13 = arith.constant dense<0.000000e+00> : vector<8x128xf32>
    %19 = tpu.matmul %17, %18, %cst_13 {dimension_numbers = #tpu.dot_dimension_numbers<[1], [0], [0], [1], [0, 0, 1, 1], [], []>} : vector<8x128xbf16>, vector<128x128xbf16>, vector<8x128xf32> -> vector<8x128xf32>
    %c2 = arith.constant 2 : index
    %c0_14 = arith.constant 0 : index
    %20 = vector.load %arg10[%c2, %c0_14] : memref<8x256xf32, #tpu.memory_space<vmem>>, vector<1x128xf32>
    %21 = vector.broadcast %20 : vector<1x128xf32> to vector<8x128xf32>
    %22 = arith.addf %19, %21 : vector<8x128xf32>
    %cst_15 = arith.constant 0.000000e+00 : f32
    %23 = vector.broadcast %cst_15 : f32 to vector<8x128xf32>
    %24 = arith.maximumf %22, %23 : vector<8x128xf32>
    %25 = arith.truncf %24 : vector<8x128xf32> to vector<8x128xbf16>
    %c0_16 = arith.constant 0 : index
    %c0_17 = arith.constant 0 : index
    %26 = vector.load %arg5[%c0_16, %c0_17] : memref<128x128xbf16, #tpu.memory_space<vmem>>, vector<128x128xbf16>
    %cst_18 = arith.constant dense<0.000000e+00> : vector<8x128xf32>
    %27 = tpu.matmul %25, %26, %cst_18 {dimension_numbers = #tpu.dot_dimension_numbers<[1], [0], [0], [1], [0, 0, 1, 1], [], []>} : vector<8x128xbf16>, vector<128x128xbf16>, vector<8x128xf32> -> vector<8x128xf32>
    %c3 = arith.constant 3 : index
    %c0_19 = arith.constant 0 : index
    %28 = vector.load %arg10[%c3, %c0_19] : memref<8x256xf32, #tpu.memory_space<vmem>>, vector<1x128xf32>
    %29 = vector.broadcast %28 : vector<1x128xf32> to vector<8x128xf32>
    %30 = arith.addf %27, %29 : vector<8x128xf32>
    %cst_20 = arith.constant 0.000000e+00 : f32
    %31 = vector.broadcast %cst_20 : f32 to vector<8x128xf32>
    %32 = arith.maximumf %30, %31 : vector<8x128xf32>
    %33 = arith.truncf %32 : vector<8x128xf32> to vector<8x128xbf16>
    %c0_21 = arith.constant 0 : index
    %c0_22 = arith.constant 0 : index
    %34 = vector.load %arg6[%c0_21, %c0_22] : memref<128x128xbf16, #tpu.memory_space<vmem>>, vector<128x128xbf16>
    %cst_23 = arith.constant dense<0.000000e+00> : vector<8x128xf32>
    %35 = tpu.matmul %33, %34, %cst_23 {dimension_numbers = #tpu.dot_dimension_numbers<[1], [0], [0], [1], [0, 0, 1, 1], [], []>} : vector<8x128xbf16>, vector<128x128xbf16>, vector<8x128xf32> -> vector<8x128xf32>
    %c4 = arith.constant 4 : index
    %c0_24 = arith.constant 0 : index
    %36 = vector.load %arg10[%c4, %c0_24] : memref<8x256xf32, #tpu.memory_space<vmem>>, vector<1x128xf32>
    %37 = vector.broadcast %36 : vector<1x128xf32> to vector<8x128xf32>
    %38 = arith.addf %35, %37 : vector<8x128xf32>
    %cst_25 = arith.constant 0.000000e+00 : f32
    %39 = vector.broadcast %cst_25 : f32 to vector<8x128xf32>
    %40 = arith.maximumf %38, %39 : vector<8x128xf32>
    %41 = arith.truncf %40 : vector<8x128xf32> to vector<8x128xbf16>
    %c0_26 = arith.constant 0 : index
    %c0_27 = arith.constant 0 : index
    %42 = vector.load %arg7[%c0_26, %c0_27] : memref<128x128xbf16, #tpu.memory_space<vmem>>, vector<128x128xbf16>
    %cst_28 = arith.constant dense<0.000000e+00> : vector<8x128xf32>
    %43 = tpu.matmul %41, %42, %cst_28 {dimension_numbers = #tpu.dot_dimension_numbers<[1], [0], [0], [1], [0, 0, 1, 1], [], []>} : vector<8x128xbf16>, vector<128x128xbf16>, vector<8x128xf32> -> vector<8x128xf32>
    %c5 = arith.constant 5 : index
    %c0_29 = arith.constant 0 : index
    %44 = vector.load %arg10[%c5, %c0_29] : memref<8x256xf32, #tpu.memory_space<vmem>>, vector<1x128xf32>
    %45 = vector.broadcast %44 : vector<1x128xf32> to vector<8x128xf32>
    %46 = arith.addf %43, %45 : vector<8x128xf32>
    %cst_30 = arith.constant 0.000000e+00 : f32
    %47 = vector.broadcast %cst_30 : f32 to vector<8x128xf32>
    %48 = arith.maximumf %46, %47 : vector<8x128xf32>
    %49 = arith.truncf %48 : vector<8x128xf32> to vector<8x128xbf16>
    %c0_31 = arith.constant 0 : index
    %c0_32 = arith.constant 0 : index
    %50 = vector.load %arg8[%c0_31, %c0_32] : memref<128x128xbf16, #tpu.memory_space<vmem>>, vector<128x128xbf16>
    %cst_33 = arith.constant dense<0.000000e+00> : vector<8x128xf32>
    %51 = tpu.matmul %49, %50, %cst_33 {dimension_numbers = #tpu.dot_dimension_numbers<[1], [0], [0], [1], [0, 0, 1, 1], [], []>} : vector<8x128xbf16>, vector<128x128xbf16>, vector<8x128xf32> -> vector<8x128xf32>
    %c6 = arith.constant 6 : index
    %c0_34 = arith.constant 0 : index
    %52 = vector.load %arg10[%c6, %c0_34] : memref<8x256xf32, #tpu.memory_space<vmem>>, vector<1x128xf32>
    %53 = vector.broadcast %52 : vector<1x128xf32> to vector<8x128xf32>
    %54 = arith.addf %51, %53 : vector<8x128xf32>
    %cst_35 = arith.constant 0.000000e+00 : f32
    %55 = vector.broadcast %cst_35 : f32 to vector<8x128xf32>
    %56 = arith.maximumf %54, %55 : vector<8x128xf32>
    %57 = arith.truncf %56 : vector<8x128xf32> to vector<8x128xbf16>
    %c0_36 = arith.constant 0 : index
    %c0_37 = arith.constant 0 : index
    %58 = vector.load %arg9[%c0_36, %c0_37] : memref<128x256xbf16, #tpu.memory_space<vmem>>, vector<128x256xbf16>
    %cst_38 = arith.constant dense<0.000000e+00> : vector<8x256xf32>
    %59 = tpu.matmul %57, %58, %cst_38 {dimension_numbers = #tpu.dot_dimension_numbers<[1], [0], [0], [1], [0, 0, 1, 1], [], []>} : vector<8x128xbf16>, vector<128x256xbf16>, vector<8x256xf32> -> vector<8x256xf32>
    %c7 = arith.constant 7 : index
    %c0_39 = arith.constant 0 : index
    %60 = vector.load %arg10[%c7, %c0_39] : memref<8x256xf32, #tpu.memory_space<vmem>>, vector<1x256xf32>
    %61 = vector.broadcast %60 : vector<1x256xf32> to vector<8x256xf32>
    %62 = arith.addf %59, %61 : vector<8x256xf32>
    %63 = arith.truncf %62 : vector<8x256xf32> to vector<8x256xbf16>
    %c0_40 = arith.constant 0 : index
    %c0_41 = arith.constant 0 : index
    %64 = vector.load %arg11[%c0_40, %c0_41] : memref<8x256xbf16, #tpu.memory_space<vmem>>, vector<8x256xbf16>
    tpu.vector_store %arg11[%c0_40, %c0_41], %63 {strides = array<i32>} : memref<8x256xbf16, #tpu.memory_space<vmem>>, vector<8x256xbf16>,
    return
  }
  func.func @transform_0(%arg0: i32) -> (i32, i32) {
    %c0_i32 = arith.constant 0 : i32
    %c0_i32_0 = arith.constant 0 : i32
    return %arg0, %c0_i32 : i32, i32
  }
  func.func @transform_1(%arg0: i32) -> (i32, i32) {
    %c0_i32 = arith.constant 0 : i32
    %c0_i32_0 = arith.constant 0 : i32
    %c0_i32_1 = arith.constant 0 : i32
    return %c0_i32, %c0_i32_0 : i32, i32
  }
  func.func @transform_2(%arg0: i32) -> (i32, i32) {
    %c0_i32 = arith.constant 0 : i32
    %c0_i32_0 = arith.constant 0 : i32
    %c0_i32_1 = arith.constant 0 : i32
    return %c0_i32, %c0_i32_0 : i32, i32
  }
  func.func @transform_3(%arg0: i32) -> (i32, i32) {
    %c0_i32 = arith.constant 0 : i32
    %c0_i32_0 = arith.constant 0 : i32
    %c0_i32_1 = arith.constant 0 : i32
    return %c0_i32, %c0_i32_0 : i32, i32
  }
  func.func @transform_4(%arg0: i32) -> (i32, i32) {
    %c0_i32 = arith.constant 0 : i32
    %c0_i32_0 = arith.constant 0 : i32
    %c0_i32_1 = arith.constant 0 : i32
    return %c0_i32, %c0_i32_0 : i32, i32
  }
  func.func @transform_5(%arg0: i32) -> (i32, i32) {
    %c0_i32 = arith.constant 0 : i32
    %c0_i32_0 = arith.constant 0 : i32
    %c0_i32_1 = arith.constant 0 : i32
    return %c0_i32, %c0_i32_0 : i32, i32
  }
  func.func @transform_6(%arg0: i32) -> (i32, i32) {
    %c0_i32 = arith.constant 0 : i32
    %c0_i32_0 = arith.constant 0 : i32
    %c0_i32_1 = arith.constant 0 : i32
    return %c0_i32, %c0_i32_0 : i32, i32
  }
  func.func @transform_7(%arg0: i32) -> (i32, i32) {
    %c0_i32 = arith.constant 0 : i32
    %c0_i32_0 = arith.constant 0 : i32
    %c0_i32_1 = arith.constant 0 : i32
    return %c0_i32, %c0_i32_0 : i32, i32
  }
  func.func @transform_8(%arg0: i32) -> (i32, i32) {
    %c0_i32 = arith.constant 0 : i32
    %c0_i32_0 = arith.constant 0 : i32
    %c0_i32_1 = arith.constant 0 : i32
    return %c0_i32, %c0_i32_0 : i32, i32
  }
  func.func @transform_9(%arg0: i32) -> (i32, i32) {
    %c0_i32 = arith.constant 0 : i32
    %c0_i32_0 = arith.constant 0 : i32
    %c0_i32_1 = arith.constant 0 : i32
    return %c0_i32, %c0_i32_0 : i32, i32
  }
  func.func @transform_10(%arg0: i32) -> (i32, i32) {
    %c0_i32 = arith.constant 0 : i32
    %c0_i32_0 = arith.constant 0 : i32
    return %arg0, %c0_i32 : i32, i32
  }
}

</mosaic_0001>

<llo_original>
// kernel: tpu_custom_call.1
$region0: #{tpu_custom_call.1}
  #allocation0 [shape = 'u32[]', space=smem, size = 0x4, offset = 0x4, fixed_abs, tag = 'smem constant byte address 0x4 - core index']
  #allocation1 [shape = 'u32[72,128]{1,0:T(1,128)}', space=vmem, size = 0x9000, scoped, tag = 'internal scratch']
  %s0 = inlined_call_operand.hbm [shape: f32[8,256], index: 0, kind: input, shape index: {}]
  %s1 = inlined_call_operand.hbm [shape: bf16[256,128], index: 1, kind: input, shape index: {}]
  %s2 = inlined_call_operand.hbm [shape: bf16[128,128], index: 2, kind: input, shape index: {}]
  %s3 = inlined_call_operand.hbm [shape: bf16[128,128], index: 3, kind: input, shape index: {}]
  %s4 = inlined_call_operand.hbm [shape: bf16[128,128], index: 4, kind: input, shape index: {}]
  %s5 = inlined_call_operand.hbm [shape: bf16[128,128], index: 5, kind: input, shape index: {}]
  %s6 = inlined_call_operand.hbm [shape: bf16[128,128], index: 6, kind: input, shape index: {}]
  %s7 = inlined_call_operand.hbm [shape: bf16[128,128], index: 7, kind: input, shape index: {}]
  %s8 = inlined_call_operand.hbm [shape: bf16[128,256], index: 8, kind: input, shape index: {}]
  %s9 = inlined_call_operand.hbm [shape: f32[8,256], index: 9, kind: input, shape index: {}]
  %s10 = inlined_call_operand.hbm [shape: bf16[8,256], index: 10, kind: output, shape index: {}]
  %s11 = sld [smem:[#allocation0]]
  $region90: #{tpu_custom_call.1} parent=0
    _
  %s13 = ssub.s32 1, %s11
  %s14 = scalar_select 0, %s13, %s11
  $region1: #{tpu_custom_call.1} parent=0
    #allocation2 [shape = 'u8[8192]{0}', space=vmem, size = 0x2000, scoped, tag = 'input window, operand 0, single buffered']
    #allocation3 [shape = 's32[1]{0}', space=sflag, size = 0x4, scoped, tag = 'scoped memory for tpu_custom_call.1']
    #allocation4 [shape = 's32[1]{0}', space=sflag, size = 0x4, scoped, tag = 'scoped memory for tpu_custom_call.1']
    #allocation5 [shape = 'u8[65536]{0}', space=vmem, size = 0x10000, scoped, tag = 'input window, operand 1, single buffered']
    #allocation6 [shape = 's32[1]{0}', space=sflag, size = 0x4, scoped, tag = 'scoped memory for tpu_custom_call.1']
    #allocation7 [shape = 'u8[32768]{0}', space=vmem, size = 0x8000, scoped, tag = 'input window, operand 2, single buffered']
    #allocation8 [shape = 'u8[32768]{0}', space=vmem, size = 0x8000, scoped, tag = 'input window, operand 3, single buffered']
    #allocation9 [shape = 's32[1]{0}', space=sflag, size = 0x4, scoped, tag = 'scoped memory for tpu_custom_call.1']
    #allocation10 [shape = 'u8[32768]{0}', space=vmem, size = 0x8000, scoped, tag = 'input window, operand 4, single buffered']
    #allocation11 [shape = 'u8[32768]{0}', space=vmem, size = 0x8000, scoped, tag = 'input window, operand 5, single buffered']
    #allocation12 [shape = 's32[1]{0}', space=sflag, size = 0x4, scoped, tag = 'scoped memory for tpu_custom_call.1']
    #allocation13 [shape = 'u8[32768]{0}', space=vmem, size = 0x8000, scoped, tag = 'input window, operand 6, single buffered']
    #allocation14 [shape = 'u8[32768]{0}', space=vmem, size = 0x8000, scoped, tag = 'input window, operand 7, single buffered']
    #allocation15 [shape = 's32[1]{0}', space=sflag, size = 0x4, scoped, tag = 'scoped memory for tpu_custom_call.1']
    #allocation16 [shape = 'u8[65536]{0}', space=vmem, size = 0x10000, scoped, tag = 'input window, operand 8, single buffered']
    #allocation17 [shape = 'u8[8192]{0}', space=vmem, size = 0x2000, scoped, tag = 'input window, operand 9, single buffered']
    #allocation18 [shape = 's32[1]{0}', space=sflag, size = 0x4, scoped, tag = 'scoped memory for tpu_custom_call.1']
    #allocation19 [shape = 'u8[4096]{0}', space=vmem, size = 0x1000, scoped, tag = 'output window, operand 0, single buffered']
    %15 = vsyncpa [#allocation3], 0
    %16 = vsyncpa [#allocation6], 0
    %17 = vsyncpa [#allocation9], 0
    %18 = vsyncpa [#allocation12], 0
    %19 = vsyncpa [#allocation15], 0
    %20 = vsyncpa [#allocation18], 0
    %21 = vsyncpa [#allocation4], 0
    // Predicated region
    $region2: #{tpu_custom_call.1} parent=1 // pred_check
      _
    $region3: #{tpu_custom_call.1} parent=1 // pred_check_branch
      %23 = sbr.rel (0) target = $region5
    $region4: #{tpu_custom_call.1} parent=1 // pred_region
      %25 = vsyncadd [#allocation3], 0
      %s27 = sshll.u32 %s0, 4
      %s28 = int_to_ptr.hbm [resolvable:$true] %s27
      %s29 = sshll.u32 [#allocation2], 4
      %s30 = int_to_ptr.vmem [resolvable:$true] %s29
      %32 = dma.hbm_to_vmem [thread:$0]  %s28, 256, %s30, [#allocation3]
    $region5: #{tpu_custom_call.1} parent=1 // pred_fallthru
      _
    // Predicated region
    $region6: #{tpu_custom_call.1} parent=1 // pred_check
      _
    $region7: #{tpu_custom_call.1} parent=1 // pred_check_branch
      %34 = sbr.rel (0) target = $region9
    $region8: #{tpu_custom_call.1} parent=1 // pred_region
      %36 = vsyncadd [#allocation6], 0
      %s37 = sshll.u32 %s1, 4
      %s38 = int_to_ptr.hbm [resolvable:$true] %s37
      %s39 = sshll.u32 [#allocation5], 4
      %s40 = int_to_ptr.vmem [resolvable:$true] %s39
      %45 = dma.hbm_to_vmem [thread:$0]  %s38, 2048, %s40, [#allocation6], 64, 64, 4
    $region9: #{tpu_custom_call.1} parent=1 // pred_fallthru
      _
    // Predicated region
    $region10: #{tpu_custom_call.1} parent=1 // pred_check
      _
    $region11: #{tpu_custom_call.1} parent=1 // pred_check_branch
      %47 = sbr.rel (0) target = $region13
    $region12: #{tpu_custom_call.1} parent=1 // pred_region
      %49 = vsyncadd [#allocation6], 0
      %s50 = sshll.u32 %s2, 4
      %s51 = int_to_ptr.hbm [resolvable:$true] %s50
      %s52 = sshll.u32 [#allocation7], 4
      %s53 = int_to_ptr.vmem [resolvable:$true] %s52
      %58 = dma.hbm_to_vmem [thread:$0]  %s51, 1024, %s53, [#allocation6], 64, 64, 4
    $region13: #{tpu_custom_call.1} parent=1 // pred_fallthru
      _
    // Predicated region
    $region14: #{tpu_custom_call.1} parent=1 // pred_check
      _
    $region15: #{tpu_custom_call.1} parent=1 // pred_check_branch
      %60 = sbr.rel (0) target = $region17
    $region16: #{tpu_custom_call.1} parent=1 // pred_region
      %62 = vsyncadd [#allocation9], 0
      %s63 = sshll.u32 %s3, 4
      %s64 = int_to_ptr.hbm [resolvable:$true] %s63
      %s65 = sshll.u32 [#allocation8], 4
      %s66 = int_to_ptr.vmem [resolvable:$true] %s65
      %71 = dma.hbm_to_vmem [thread:$0]  %s64, 1024, %s66, [#allocation9], 64, 64, 4
    $region17: #{tpu_custom_call.1} parent=1 // pred_fallthru
      _
    // Predicated region
    $region18: #{tpu_custom_call.1} parent=1 // pred_check
      _
    $region19: #{tpu_custom_call.1} parent=1 // pred_check_branch
      %73 = sbr.rel (0) target = $region21
    $region20: #{tpu_custom_call.1} parent=1 // pred_region
      %75 = vsyncadd [#allocation9], 0
      %s76 = sshll.u32 %s4, 4
      %s77 = int_to_ptr.hbm [resolvable:$true] %s76
      %s78 = sshll.u32 [#allocation10], 4
      %s79 = int_to_ptr.vmem [resolvable:$true] %s78
      %84 = dma.hbm_to_vmem [thread:$0]  %s77, 1024, %s79, [#allocation9], 64, 64, 4
    $region21: #{tpu_custom_call.1} parent=1 // pred_fallthru
      _
    // Predicated region
    $region22: #{tpu_custom_call.1} parent=1 // pred_check
      _
    $region23: #{tpu_custom_call.1} parent=1 // pred_check_branch
      %86 = sbr.rel (0) target = $region25
    $region24: #{tpu_custom_call.1} parent=1 // pred_region
      %88 = vsyncadd [#allocation12], 0
      %s89 = sshll.u32 %s5, 4
      %s90 = int_to_ptr.hbm [resolvable:$true] %s89
      %s91 = sshll.u32 [#allocation11], 4
      %s92 = int_to_ptr.vmem [resolvable:$true] %s91
      %97 = dma.hbm_to_vmem [thread:$0]  %s90, 1024, %s92, [#allocation12], 64, 64, 4
    $region25: #{tpu_custom_call.1} parent=1 // pred_fallthru
      _
    // Predicated region
    $region26: #{tpu_custom_call.1} parent=1 // pred_check
      _
    $region27: #{tpu_custom_call.1} parent=1 // pred_check_branch
      %99 = sbr.rel (0) target = $region29
    $region28: #{tpu_custom_call.1} parent=1 // pred_region
      %101 = vsyncadd [#allocation12], 0
      %s102 = sshll.u32 %s6, 4
      %s103 = int_to_ptr.hbm [resolvable:$true] %s102
      %s104 = sshll.u32 [#allocation13], 4
      %s105 = int_to_ptr.vmem [resolvable:$true] %s104
      %110 = dma.hbm_to_vmem [thread:$0]  %s103, 1024, %s105, [#allocation12], 64, 64, 4
    $region29: #{tpu_custom_call.1} parent=1 // pred_fallthru
      _
    // Predicated region
    $region30: #{tpu_custom_call.1} parent=1 // pred_check
      _
    $region31: #{tpu_custom_call.1} parent=1 // pred_check_branch
      %112 = sbr.rel (0) target = $region33
    $region32: #{tpu_custom_call.1} parent=1 // pred_region
      %114 = vsyncadd [#allocation15], 0
      %s115 = sshll.u32 %s7, 4
      %s116 = int_to_ptr.hbm [resolvable:$true] %s115
      %s117 = sshll.u32 [#allocation14], 4
      %s118 = int_to_ptr.vmem [resolvable:$true] %s117
      %123 = dma.hbm_to_vmem [thread:$0]  %s116, 1024, %s118, [#allocation15], 64, 64, 4
    $region33: #{tpu_custom_call.1} parent=1 // pred_fallthru
      _
    // Predicated region
    $region34: #{tpu_custom_call.1} parent=1 // pred_check
      _
    $region35: #{tpu_custom_call.1} parent=1 // pred_check_branch
      %125 = sbr.rel (0) target = $region37
    $region36: #{tpu_custom_call.1} parent=1 // pred_region
      %127 = vsyncadd [#allocation15], 0
      %s128 = sshll.u32 %s8, 4
      %s129 = int_to_ptr.hbm [resolvable:$true] %s128
      %s130 = sshll.u32 [#allocation16], 4
      %s131 = int_to_ptr.vmem [resolvable:$true] %s130
      %136 = dma.hbm_to_vmem [thread:$0]  %s129, 2048, %s131, [#allocation15], 128, 128, 8
    $region37: #{tpu_custom_call.1} parent=1 // pred_fallthru
      _
    // Predicated region
    $region38: #{tpu_custom_call.1} parent=1 // pred_check
      _
    $region39: #{tpu_custom_call.1} parent=1 // pred_check_branch
      %138 = sbr.rel (0) target = $region41
    $region40: #{tpu_custom_call.1} parent=1 // pred_region
      %140 = vsyncadd [#allocation18], 0
      %s142 = sshll.u32 %s9, 4
      %s143 = int_to_ptr.hbm [resolvable:$true] %s142
      %s144 = sshll.u32 [#allocation17], 4
      %s145 = int_to_ptr.vmem [resolvable:$true] %s144
      %147 = dma.hbm_to_vmem [thread:$0]  %s143, 256, %s145, [#allocation18]
    $region41: #{tpu_custom_call.1} parent=1 // pred_fallthru
      _
    // Predicated region
    $region42: #{tpu_custom_call.1} parent=1 // pred_check
      _
    $region43: #{tpu_custom_call.1} parent=1 // pred_check_branch
      %149 = sbr.rel (0) target = $region45
    $region44: #{tpu_custom_call.1} parent=1 // pred_region
      %151 = dma.done [#allocation3], 256
    $region45: #{tpu_custom_call.1} parent=1 // pred_fallthru
      _
    // Predicated region
    $region46: #{tpu_custom_call.1} parent=1 // pred_check
      _
    $region47: #{tpu_custom_call.1} parent=1 // pred_check_branch
      %153 = sbr.rel (0) target = $region49
    $region48: #{tpu_custom_call.1} parent=1 // pred_region
      %155 = dma.done [#allocation6], 2048
    $region49: #{tpu_custom_call.1} parent=1 // pred_fallthru
      _
    // Predicated region
    $region50: #{tpu_custom_call.1} parent=1 // pred_check
      _
    $region51: #{tpu_custom_call.1} parent=1 // pred_check_branch
      %157 = sbr.rel (0) target = $region53
    $region52: #{tpu_custom_call.1} parent=1 // pred_region
      %159 = dma.done [#allocation6], 1024
    $region53: #{tpu_custom_call.1} parent=1 // pred_fallthru
      _
    // Predicated region
    $region54: #{tpu_custom_call.1} parent=1 // pred_check
      _
    $region55: #{tpu_custom_call.1} parent=1 // pred_check_branch
      %161 = sbr.rel (0) target = $region57
    $region56: #{tpu_custom_call.1} parent=1 // pred_region
      %163 = dma.done [#allocation9], 1024
    $region57: #{tpu_custom_call.1} parent=1 // pred_fallthru
      _
    // Predicated region
    $region58: #{tpu_custom_call.1} parent=1 // pred_check
      _
    $region59: #{tpu_custom_call.1} parent=1 // pred_check_branch
      %165 = sbr.rel (0) target = $region61
    $region60: #{tpu_custom_call.1} parent=1 // pred_region
      %167 = dma.done [#allocation9], 1024
    $region61: #{tpu_custom_call.1} parent=1 // pred_fallthru
      _
    // Predicated region
    $region62: #{tpu_custom_call.1} parent=1 // pred_check
      _
    $region63: #{tpu_custom_call.1} parent=1 // pred_check_branch
      %169 = sbr.rel (0) target = $region65
    $region64: #{tpu_custom_call.1} parent=1 // pred_region
      %171 = dma.done [#allocation12], 1024
    $region65: #{tpu_custom_call.1} parent=1 // pred_fallthru
      _
    // Predicated region
    $region66: #{tpu_custom_call.1} parent=1 // pred_check
      _
    $region67: #{tpu_custom_call.1} parent=1 // pred_check_branch
      %173 = sbr.rel (0) target = $region69
    $region68: #{tpu_custom_call.1} parent=1 // pred_region
      %175 = dma.done [#allocation12], 1024
    $region69: #{tpu_custom_call.1} parent=1 // pred_fallthru
      _
    // Predicated region
    $region70: #{tpu_custom_call.1} parent=1 // pred_check
      _
    $region71: #{tpu_custom_call.1} parent=1 // pred_check_branch
      %177 = sbr.rel (0) target = $region73
    $region72: #{tpu_custom_call.1} parent=1 // pred_region
      %179 = dma.done [#allocation15], 1024
    $region73: #{tpu_custom_call.1} parent=1 // pred_fallthru
      _
    // Predicated region
    $region74: #{tpu_custom_call.1} parent=1 // pred_check
      _
    $region75: #{tpu_custom_call.1} parent=1 // pred_check_branch
      %181 = sbr.rel (0) target = $region77
    $region76: #{tpu_custom_call.1} parent=1 // pred_region
      %183 = dma.done [#allocation15], 2048
    $region77: #{tpu_custom_call.1} parent=1 // pred_fallthru
      _
    // Predicated region
    $region78: #{tpu_custom_call.1} parent=1 // pred_check
      _
    $region79: #{tpu_custom_call.1} parent=1 // pred_check_branch
      %185 = sbr.rel (0) target = $region81
    $region80: #{tpu_custom_call.1} parent=1 // pred_region
      %187 = dma.done [#allocation18], 256
    $region81: #{tpu_custom_call.1} parent=1 // pred_fallthru
      _
    %v188 = vld [vmem:[#allocation2] sm:$0xff]
    %v189 = vld [vmem:[#allocation2 + $0x8] sm:$0xff]
    %v190 = vpack.c.bf16 %v188, %v188
    %v191 = vpack.c.bf16 %v189, %v189
    %v192 = vld [vmem:[#allocation5] sm:$0xf]
    %v193 = vld [vmem:[#allocation5 + $0x4] sm:$0xf]
    %v194 = vld [vmem:[#allocation5 + $0x8] sm:$0xf]
    %v195 = vld [vmem:[#allocation5 + $0xc] sm:$0xf]
    %v196 = vld [vmem:[#allocation5 + $0x10] sm:$0xf]
    %v197 = vld [vmem:[#allocation5 + $0x14] sm:$0xf]
    %v198 = vld [vmem:[#allocation5 + $0x18] sm:$0xf]
    %v199 = vld [vmem:[#allocation5 + $0x1c] sm:$0xf]
    %v200 = vld [vmem:[#allocation5 + $0x20] sm:$0xf]
    %v201 = vld [vmem:[#allocation5 + $0x24] sm:$0xf]
    %v202 = vld [vmem:[#allocation5 + $0x28] sm:$0xf]
    %v203 = vld [vmem:[#allocation5 + $0x2c] sm:$0xf]
    %v204 = vld [vmem:[#allocation5 + $0x30] sm:$0xf]
    %v205 = vld [vmem:[#allocation5 + $0x34] sm:$0xf]
    %v206 = vld [vmem:[#allocation5 + $0x38] sm:$0xf]
    %v207 = vld [vmem:[#allocation5 + $0x3c] sm:$0xf]
    %v208 = vld [vmem:[#allocation5 + $0x40] sm:$0xf]
    %v209 = vld [vmem:[#allocation5 + $0x44] sm:$0xf]
    %v210 = vld [vmem:[#allocation5 + $0x48] sm:$0xf]
    %v211 = vld [vmem:[#allocation5 + $0x4c] sm:$0xf]
    %v212 = vld [vmem:[#allocation5 + $0x50] sm:$0xf]
    %v213 = vld [vmem:[#allocation5 + $0x54] sm:$0xf]
    %v214 = vld [vmem:[#allocation5 + $0x58] sm:$0xf]
    %v215 = vld [vmem:[#allocation5 + $0x5c] sm:$0xf]
    %v216 = vld [vmem:[#allocation5 + $0x60] sm:$0xf]
    %v217 = vld [vmem:[#allocation5 + $0x64] sm:$0xf]
    %v218 = vld [vmem:[#allocation5 + $0x68] sm:$0xf]
    %v219 = vld [vmem:[#allocation5 + $0x6c] sm:$0xf]
    %v220 = vld [vmem:[#allocation5 + $0x70] sm:$0xf]
    %v221 = vld [vmem:[#allocation5 + $0x74] sm:$0xf]
    %v222 = vld [vmem:[#allocation5 + $0x78] sm:$0xf]
    %v223 = vld [vmem:[#allocation5 + $0x7c] sm:$0xf]
    %v224 = vld [vmem:[#allocation17] ss:$0 sm:$0xff]
    %v257 = vunpack.c.l.b16 %v192
    %v258 = vunpack.c.l.b16 %v193
    %v259 = vunpack.c.l.b16 %v194
    %v260 = vunpack.c.l.b16 %v195
    %v261 = vunpack.c.l.b16 %v196
    %v262 = vunpack.c.l.b16 %v197
    %v263 = vunpack.c.l.b16 %v198
    %v264 = vunpack.c.l.b16 %v199
    %v265 = vunpack.c.l.b16 %v200
    %v266 = vunpack.c.l.b16 %v201
    %v267 = vunpack.c.l.b16 %v202
    %v268 = vunpack.c.l.b16 %v203
    %v269 = vunpack.c.l.b16 %v204
    %v270 = vunpack.c.l.b16 %v205
    %v271 = vunpack.c.l.b16 %v206
    %v272 = vunpack.c.l.b16 %v207
    %v273 = vunpack.c.l.b16 %v208
    %v274 = vunpack.c.l.b16 %v209
    %v275 = vunpack.c.l.b16 %v210
    %v276 = vunpack.c.l.b16 %v211
    %v277 = vunpack.c.l.b16 %v212
    %v278 = vunpack.c.l.b16 %v213
    %v279 = vunpack.c.l.b16 %v214
    %v280 = vunpack.c.l.b16 %v215
    %v281 = vunpack.c.l.b16 %v216
    %v282 = vunpack.c.l.b16 %v217
    %v283 = vunpack.c.l.b16 %v218
    %v284 = vunpack.c.l.b16 %v219
    %v285 = vunpack.c.l.b16 %v220
    %v286 = vunpack.c.l.b16 %v221
    %v287 = vunpack.c.l.b16 %v222
    %v288 = vunpack.c.l.b16 %v223
    %v289 = vpack.c.b16 %v258, %v257
    %v290 = vpack.c.b16 %v260, %v259
    %v291 = vpack.c.b16 %v262, %v261
    %v292 = vpack.c.b16 %v264, %v263
    %v293 = vpack.c.b16 %v266, %v265
    %v294 = vpack.c.b16 %v268, %v267
    %v295 = vpack.c.b16 %v270, %v269
    %v296 = vpack.c.b16 %v272, %v271
    %v297 = vpack.c.b16 %v274, %v273
    %v298 = vpack.c.b16 %v276, %v275
    %v299 = vpack.c.b16 %v278, %v277
    %v300 = vpack.c.b16 %v280, %v279
    %v301 = vpack.c.b16 %v282, %v281
    %v302 = vpack.c.b16 %v284, %v283
    %v303 = vpack.c.b16 %v286, %v285
    %v304 = vpack.c.b16 %v288, %v287
    %321 = vmatpush.bf16.msra.mxu0 %v296
    %322 = vmatpush.bf16.msra.mxu0 %v295
    %323 = vmatpush.bf16.msra.mxu0 %v294
    %324 = vmatpush.bf16.msra.mxu0 %v293
    %325 = vmatpush.bf16.msra.mxu0 %v292
    %326 = vmatpush.bf16.msra.mxu0 %v291
    %327 = vmatpush.bf16.msra.mxu0 %v290
    %328 = vmatpush.bf16.msra.mxu0 %v289
    %329 = vmatmul.bf16.gmra.mxu0 %v190
    %v330 = vpop.f32.mrf.mxu0
    %v331 = vadd.f32 %v224, %v330
    %v332 = vpop.f32.mrf.mxu0
    %333 = vdwg.mxu0
    %334 = vmatpush.bf16.msra.mxu0 %v304
    %335 = vmatpush.bf16.msra.mxu0 %v303
    %336 = vmatpush.bf16.msra.mxu0 %v302
    %337 = vmatpush.bf16.msra.mxu0 %v301
    %338 = vmatpush.bf16.msra.mxu0 %v300
    %339 = vmatpush.bf16.msra.mxu0 %v299
    %340 = vmatpush.bf16.msra.mxu0 %v298
    %341 = vmatpush.bf16.msra.mxu0 %v297
    %342 = vmatmul.bf16.gmra.mxu0 %v191
    %v343 = vpop.f32.mrf.mxu0
    %v344 = vadd.f32 %v331, %v343
    %v345 = vpop.f32.mrf.mxu0
    %346 = vdwg.mxu0
    %v347 = vmax.f32 %v344, 0.0
    %v348 = vpack.c.bf16 %v347, %v347
    %v349 = vld [vmem:[#allocation7] sm:$0xf]
    %v350 = vld [vmem:[#allocation7 + $0x4] sm:$0xf]
    %v351 = vld [vmem:[#allocation7 + $0x8] sm:$0xf]
    %v352 = vld [vmem:[#allocation7 + $0xc] sm:$0xf]
    %v353 = vld [vmem:[#allocation7 + $0x10] sm:$0xf]
    %v354 = vld [vmem:[#allocation7 + $0x14] sm:$0xf]
    %v355 = vld [vmem:[#allocation7 + $0x18] sm:$0xf]
    %v356 = vld [vmem:[#allocation7 + $0x1c] sm:$0xf]
    %v357 = vld [vmem:[#allocation7 + $0x20] sm:$0xf]
    %v358 = vld [vmem:[#allocation7 + $0x24] sm:$0xf]
    %v359 = vld [vmem:[#allocation7 + $0x28] sm:$0xf]
    %v360 = vld [vmem:[#allocation7 + $0x2c] sm:$0xf]
    %v361 = vld [vmem:[#allocation7 + $0x30] sm:$0xf]
    %v362 = vld [vmem:[#allocation7 + $0x34] sm:$0xf]
    %v363 = vld [vmem:[#allocation7 + $0x38] sm:$0xf]
    %v364 = vld [vmem:[#allocation7 + $0x3c] sm:$0xf]
    %v365 = vld [vmem:[#allocation17 + $0x1] ss:$0 sm:$0xff]
    %v382 = vunpack.c.l.b16 %v349
    %v383 = vunpack.c.l.b16 %v350
    %v384 = vunpack.c.l.b16 %v351
    %v385 = vunpack.c.l.b16 %v352
    %v386 = vunpack.c.l.b16 %v353
    %v387 = vunpack.c.l.b16 %v354
    %v388 = vunpack.c.l.b16 %v355
    %v389 = vunpack.c.l.b16 %v356
    %v390 = vunpack.c.l.b16 %v357
    %v391 = vunpack.c.l.b16 %v358
    %v392 = vunpack.c.l.b16 %v359
    %v393 = vunpack.c.l.b16 %v360
    %v394 = vunpack.c.l.b16 %v361
    %v395 = vunpack.c.l.b16 %v362
    %v396 = vunpack.c.l.b16 %v363
    %v397 = vunpack.c.l.b16 %v364
    %v398 = vpack.c.b16 %v383, %v382
    %v399 = vpack.c.b16 %v385, %v384
    %v400 = vpack.c.b16 %v387, %v386
    %v401 = vpack.c.b16 %v389, %v388
    %v402 = vpack.c.b16 %v391, %v390
    %v403 = vpack.c.b16 %v393, %v392
    %v404 = vpack.c.b16 %v395, %v394
    %v405 = vpack.c.b16 %v397, %v396
    %414 = vmatpush.bf16.msra.mxu0 %v405
    %415 = vmatpush.bf16.msra.mxu0 %v404
    %416 = vmatpush.bf16.msra.mxu0 %v403
    %417 = vmatpush.bf16.msra.mxu0 %v402
    %418 = vmatpush.bf16.msra.mxu0 %v401
    %419 = vmatpush.bf16.msra.mxu0 %v400
    %420 = vmatpush.bf16.msra.mxu0 %v399
    %421 = vmatpush.bf16.msra.mxu0 %v398
    %422 = vmatmul.bf16.gmra.mxu0 %v348
    %v423 = vpop.f32.mrf.mxu0
    %v424 = vadd.f32 %v365, %v423
    %v425 = vpop.f32.mrf.mxu0
    %426 = vdwg.mxu0
    %v427 = vmax.f32 %v424, 0.0
    %v428 = vpack.c.bf16 %v427, %v427
    %v429 = vld [vmem:[#allocation8] sm:$0xf]
    %v430 = vld [vmem:[#allocation8 + $0x4] sm:$0xf]
    %v431 = vld [vmem:[#allocation8 + $0x8] sm:$0xf]
    %v432 = vld [vmem:[#allocation8 + $0xc] sm:$0xf]
    %v433 = vld [vmem:[#allocation8 + $0x10] sm:$0xf]
    %v434 = vld [vmem:[#allocation8 + $0x14] sm:$0xf]
    %v435 = vld [vmem:[#allocation8 + $0x18] sm:$0xf]
    %v436 = vld [vmem:[#allocation8 + $0x1c] sm:$0xf]
    %v437 = vld [vmem:[#allocation8 + $0x20] sm:$0xf]
    %v438 = vld [vmem:[#allocation8 + $0x24] sm:$0xf]
    %v439 = vld [vmem:[#allocation8 + $0x28] sm:$0xf]
    %v440 = vld [vmem:[#allocation8 + $0x2c] sm:$0xf]
    %v441 = vld [vmem:[#allocation8 + $0x30] sm:$0xf]
    %v442 = vld [vmem:[#allocation8 + $0x34] sm:$0xf]
    %v443 = vld [vmem:[#allocation8 + $0x38] sm:$0xf]
    %v444 = vld [vmem:[#allocation8 + $0x3c] sm:$0xf]
    %v445 = vld [vmem:[#allocation17 + $0x2] ss:$0 sm:$0xff]
    %v462 = vunpack.c.l.b16 %v429
    %v463 = vunpack.c.l.b16 %v430
    %v464 = vunpack.c.l.b16 %v431
    %v465 = vunpack.c.l.b16 %v432
    %v466 = vunpack.c.l.b16 %v433
    %v467 = vunpack.c.l.b16 %v434
    %v468 = vunpack.c.l.b16 %v435
    %v469 = vunpack.c.l.b16 %v436
    %v470 = vunpack.c.l.b16 %v437
    %v471 = vunpack.c.l.b16 %v438
    %v472 = vunpack.c.l.b16 %v439
    %v473 = vunpack.c.l.b16 %v440
    %v474 = vunpack.c.l.b16 %v441
    %v475 = vunpack.c.l.b16 %v442
    %v476 = vunpack.c.l.b16 %v443
    %v477 = vunpack.c.l.b16 %v444
    %v478 = vpack.c.b16 %v463, %v462
    %v479 = vpack.c.b16 %v465, %v464
    %v480 = vpack.c.b16 %v467, %v466
    %v481 = vpack.c.b16 %v469, %v468
    %v482 = vpack.c.b16 %v471, %v470
    %v483 = vpack.c.b16 %v473, %v472
    %v484 = vpack.c.b16 %v475, %v474
    %v485 = vpack.c.b16 %v477, %v476
    %494 = vmatpush.bf16.msra.mxu0 %v485
    %495 = vmatpush.bf16.msra.mxu0 %v484
    %496 = vmatpush.bf16.msra.mxu0 %v483
    %497 = vmatpush.bf16.msra.mxu0 %v482
    %498 = vmatpush.bf16.msra.mxu0 %v481
    %499 = vmatpush.bf16.msra.mxu0 %v480
    %500 = vmatpush.bf16.msra.mxu0 %v479
    %501 = vmatpush.bf16.msra.mxu0 %v478
    %502 = vmatmul.bf16.gmra.mxu0 %v428
    %v503 = vpop.f32.mrf.mxu0
    %v504 = vadd.f32 %v445, %v503
    %v505 = vpop.f32.mrf.mxu0
    %506 = vdwg.mxu0
    %v507 = vmax.f32 %v504, 0.0
    %v508 = vpack.c.bf16 %v507, %v507
    %v509 = vld [vmem:[#allocation10] sm:$0xf]
    %v510 = vld [vmem:[#allocation10 + $0x4] sm:$0xf]
    %v511 = vld [vmem:[#allocation10 + $0x8] sm:$0xf]
    %v512 = vld [vmem:[#allocation10 + $0xc] sm:$0xf]
    %v513 = vld [vmem:[#allocation10 + $0x10] sm:$0xf]
    %v514 = vld [vmem:[#allocation10 + $0x14] sm:$0xf]
    %v515 = vld [vmem:[#allocation10 + $0x18] sm:$0xf]
    %v516 = vld [vmem:[#allocation10 + $0x1c] sm:$0xf]
    %v517 = vld [vmem:[#allocation10 + $0x20] sm:$0xf]
    %v518 = vld [vmem:[#allocation10 + $0x24] sm:$0xf]
    %v519 = vld [vmem:[#allocation10 + $0x28] sm:$0xf]
    %v520 = vld [vmem:[#allocation10 + $0x2c] sm:$0xf]
    %v521 = vld [vmem:[#allocation10 + $0x30] sm:$0xf]
    %v522 = vld [vmem:[#allocation10 + $0x34] sm:$0xf]
    %v523 = vld [vmem:[#allocation10 + $0x38] sm:$0xf]
    %v524 = vld [vmem:[#allocation10 + $0x3c] sm:$0xf]
    %v525 = vld [vmem:[#allocation17 + $0x3] ss:$0 sm:$0xff]
    %v542 = vunpack.c.l.b16 %v509
    %v543 = vunpack.c.l.b16 %v510
    %v544 = vunpack.c.l.b16 %v511
    %v545 = vunpack.c.l.b16 %v512
    %v546 = vunpack.c.l.b16 %v513
    %v547 = vunpack.c.l.b16 %v514
    %v548 = vunpack.c.l.b16 %v515
    %v549 = vunpack.c.l.b16 %v516
    %v550 = vunpack.c.l.b16 %v517
    %v551 = vunpack.c.l.b16 %v518
    %v552 = vunpack.c.l.b16 %v519
    %v553 = vunpack.c.l.b16 %v520
    %v554 = vunpack.c.l.b16 %v521
    %v555 = vunpack.c.l.b16 %v522
    %v556 = vunpack.c.l.b16 %v523
    %v557 = vunpack.c.l.b16 %v524
    %v558 = vpack.c.b16 %v543, %v542
    %v559 = vpack.c.b16 %v545, %v544
    %v560 = vpack.c.b16 %v547, %v546
    %v561 = vpack.c.b16 %v549, %v548
    %v562 = vpack.c.b16 %v551, %v550
    %v563 = vpack.c.b16 %v553, %v552
    %v564 = vpack.c.b16 %v555, %v554
    %v565 = vpack.c.b16 %v557, %v556
    %574 = vmatpush.bf16.msra.mxu0 %v565
    %575 = vmatpush.bf16.msra.mxu0 %v564
    %576 = vmatpush.bf16.msra.mxu0 %v563
    %577 = vmatpush.bf16.msra.mxu0 %v562
    %578 = vmatpush.bf16.msra.mxu0 %v561
    %579 = vmatpush.bf16.msra.mxu0 %v560
    %580 = vmatpush.bf16.msra.mxu0 %v559
    %581 = vmatpush.bf16.msra.mxu0 %v558
    %582 = vmatmul.bf16.gmra.mxu0 %v508
    %v583 = vpop.f32.mrf.mxu0
    %v584 = vadd.f32 %v525, %v583
    %v585 = vpop.f32.mrf.mxu0
    %586 = vdwg.mxu0
    %v587 = vmax.f32 %v584, 0.0
    %v588 = vpack.c.bf16 %v587, %v587
    %v589 = vld [vmem:[#allocation11] sm:$0xf]
    %v590 = vld [vmem:[#allocation11 + $0x4] sm:$0xf]
    %v591 = vld [vmem:[#allocation11 + $0x8] sm:$0xf]
    %v592 = vld [vmem:[#allocation11 + $0xc] sm:$0xf]
    %v593 = vld [vmem:[#allocation11 + $0x10] sm:$0xf]
    %v594 = vld [vmem:[#allocation11 + $0x14] sm:$0xf]
    %v595 = vld [vmem:[#allocation11 + $0x18] sm:$0xf]
    %v596 = vld [vmem:[#allocation11 + $0x1c] sm:$0xf]
    %v597 = vld [vmem:[#allocation11 + $0x20] sm:$0xf]
    %v598 = vld [vmem:[#allocation11 + $0x24] sm:$0xf]
    %v599 = vld [vmem:[#allocation11 + $0x28] sm:$0xf]
    %v600 = vld [vmem:[#allocation11 + $0x2c] sm:$0xf]
    %v601 = vld [vmem:[#allocation11 + $0x30] sm:$0xf]
    %v602 = vld [vmem:[#allocation11 + $0x34] sm:$0xf]
    %v603 = vld [vmem:[#allocation11 + $0x38] sm:$0xf]
    %v604 = vld [vmem:[#allocation11 + $0x3c] sm:$0xf]
    %v605 = vld [vmem:[#allocation17 + $0x4] ss:$0 sm:$0xff]
    %v622 = vunpack.c.l.b16 %v589
    %v623 = vunpack.c.l.b16 %v590
    %v624 = vunpack.c.l.b16 %v591
    %v625 = vunpack.c.l.b16 %v592
    %v626 = vunpack.c.l.b16 %v593
    %v627 = vunpack.c.l.b16 %v594
    %v628 = vunpack.c.l.b16 %v595
    %v629 = vunpack.c.l.b16 %v596
    %v630 = vunpack.c.l.b16 %v597
    %v631 = vunpack.c.l.b16 %v598
    %v632 = vunpack.c.l.b16 %v599
    %v633 = vunpack.c.l.b16 %v600
    %v634 = vunpack.c.l.b16 %v601
    %v635 = vunpack.c.l.b16 %v602
    %v636 = vunpack.c.l.b16 %v603
    %v637 = vunpack.c.l.b16 %v604
    %v638 = vpack.c.b16 %v623, %v622
    %v639 = vpack.c.b16 %v625, %v624
    %v640 = vpack.c.b16 %v627, %v626
    %v641 = vpack.c.b16 %v629, %v628
    %v642 = vpack.c.b16 %v631, %v630
    %v643 = vpack.c.b16 %v633, %v632
    %v644 = vpack.c.b16 %v635, %v634
    %v645 = vpack.c.b16 %v637, %v636
    %654 = vmatpush.bf16.msra.mxu0 %v645
    %655 = vmatpush.bf16.msra.mxu0 %v644
    %656 = vmatpush.bf16.msra.mxu0 %v643
    %657 = vmatpush.bf16.msra.mxu0 %v642
    %658 = vmatpush.bf16.msra.mxu0 %v641
    %659 = vmatpush.bf16.msra.mxu0 %v640
    %660 = vmatpush.bf16.msra.mxu0 %v639
    %661 = vmatpush.bf16.msra.mxu0 %v638
    %662 = vmatmul.bf16.gmra.mxu0 %v588
    %v663 = vpop.f32.mrf.mxu0
    %v664 = vadd.f32 %v605, %v663
    %v665 = vpop.f32.mrf.mxu0
    %666 = vdwg.mxu0
    %v667 = vmax.f32 %v664, 0.0
    %v668 = vpack.c.bf16 %v667, %v667
    %v669 = vld [vmem:[#allocation13] sm:$0xf]
    %v670 = vld [vmem:[#allocation13 + $0x4] sm:$0xf]
    %v671 = vld [vmem:[#allocation13 + $0x8] sm:$0xf]
    %v672 = vld [vmem:[#allocation13 + $0xc] sm:$0xf]
    %v673 = vld [vmem:[#allocation13 + $0x10] sm:$0xf]
    %v674 = vld [vmem:[#allocation13 + $0x14] sm:$0xf]
    %v675 = vld [vmem:[#allocation13 + $0x18] sm:$0xf]
    %v676 = vld [vmem:[#allocation13 + $0x1c] sm:$0xf]
    %v677 = vld [vmem:[#allocation13 + $0x20] sm:$0xf]
    %v678 = vld [vmem:[#allocation13 + $0x24] sm:$0xf]
    %v679 = vld [vmem:[#allocation13 + $0x28] sm:$0xf]
    %v680 = vld [vmem:[#allocation13 + $0x2c] sm:$0xf]
    %v681 = vld [vmem:[#allocation13 + $0x30] sm:$0xf]
    %v682 = vld [vmem:[#allocation13 + $0x34] sm:$0xf]
    %v683 = vld [vmem:[#allocation13 + $0x38] sm:$0xf]
    %v684 = vld [vmem:[#allocation13 + $0x3c] sm:$0xf]
    %v685 = vld [vmem:[#allocation17 + $0x5] ss:$0 sm:$0xff]
    %v702 = vunpack.c.l.b16 %v669
    %v703 = vunpack.c.l.b16 %v670
    %v704 = vunpack.c.l.b16 %v671
    %v705 = vunpack.c.l.b16 %v672
    %v706 = vunpack.c.l.b16 %v673
    %v707 = vunpack.c.l.b16 %v674
    %v708 = vunpack.c.l.b16 %v675
    %v709 = vunpack.c.l.b16 %v676
    %v710 = vunpack.c.l.b16 %v677
    %v711 = vunpack.c.l.b16 %v678
    %v712 = vunpack.c.l.b16 %v679
    %v713 = vunpack.c.l.b16 %v680
    %v714 = vunpack.c.l.b16 %v681
    %v715 = vunpack.c.l.b16 %v682
    %v716 = vunpack.c.l.b16 %v683
    %v717 = vunpack.c.l.b16 %v684
    %v718 = vpack.c.b16 %v703, %v702
    %v719 = vpack.c.b16 %v705, %v704
    %v720 = vpack.c.b16 %v707, %v706
    %v721 = vpack.c.b16 %v709, %v708
    %v722 = vpack.c.b16 %v711, %v710
    %v723 = vpack.c.b16 %v713, %v712
    %v724 = vpack.c.b16 %v715, %v714
    %v725 = vpack.c.b16 %v717, %v716
    %734 = vmatpush.bf16.msra.mxu0 %v725
    %735 = vmatpush.bf16.msra.mxu0 %v724
    %736 = vmatpush.bf16.msra.mxu0 %v723
    %737 = vmatpush.bf16.msra.mxu0 %v722
    %738 = vmatpush.bf16.msra.mxu0 %v721
    %739 = vmatpush.bf16.msra.mxu0 %v720
    %740 = vmatpush.bf16.msra.mxu0 %v719
    %741 = vmatpush.bf16.msra.mxu0 %v718
    %742 = vmatmul.bf16.gmra.mxu0 %v668
    %v743 = vpop.f32.mrf.mxu0
    %v744 = vadd.f32 %v685, %v743
    %v745 = vpop.f32.mrf.mxu0
    %746 = vdwg.mxu0
    %v747 = vmax.f32 %v744, 0.0
    %v748 = vpack.c.bf16 %v747, %v747
    %v749 = vld [vmem:[#allocation14] sm:$0xf]
    %v750 = vld [vmem:[#allocation14 + $0x4] sm:$0xf]
    %v751 = vld [vmem:[#allocation14 + $0x8] sm:$0xf]
    %v752 = vld [vmem:[#allocation14 + $0xc] sm:$0xf]
    %v753 = vld [vmem:[#allocation14 + $0x10] sm:$0xf]
    %v754 = vld [vmem:[#allocation14 + $0x14] sm:$0xf]
    %v755 = vld [vmem:[#allocation14 + $0x18] sm:$0xf]
    %v756 = vld [vmem:[#allocation14 + $0x1c] sm:$0xf]
    %v757 = vld [vmem:[#allocation14 + $0x20] sm:$0xf]
    %v758 = vld [vmem:[#allocation14 + $0x24] sm:$0xf]
    %v759 = vld [vmem:[#allocation14 + $0x28] sm:$0xf]
    %v760 = vld [vmem:[#allocation14 + $0x2c] sm:$0xf]
    %v761 = vld [vmem:[#allocation14 + $0x30] sm:$0xf]
    %v762 = vld [vmem:[#allocation14 + $0x34] sm:$0xf]
    %v763 = vld [vmem:[#allocation14 + $0x38] sm:$0xf]
    %v764 = vld [vmem:[#allocation14 + $0x3c] sm:$0xf]
    %v765 = vld [vmem:[#allocation17 + $0x6] ss:$0 sm:$0xff]
    %v782 = vunpack.c.l.b16 %v749
    %v783 = vunpack.c.l.b16 %v750
    %v784 = vunpack.c.l.b16 %v751
    %v785 = vunpack.c.l.b16 %v752
    %v786 = vunpack.c.l.b16 %v753
    %v787 = vunpack.c.l.b16 %v754
    %v788 = vunpack.c.l.b16 %v755
    %v789 = vunpack.c.l.b16 %v756
    %v790 = vunpack.c.l.b16 %v757
    %v791 = vunpack.c.l.b16 %v758
    %v792 = vunpack.c.l.b16 %v759
    %v793 = vunpack.c.l.b16 %v760
    %v794 = vunpack.c.l.b16 %v761
    %v795 = vunpack.c.l.b16 %v762
    %v796 = vunpack.c.l.b16 %v763
    %v797 = vunpack.c.l.b16 %v764
    %v798 = vpack.c.b16 %v783, %v782
    %v799 = vpack.c.b16 %v785, %v784
    %v800 = vpack.c.b16 %v787, %v786
    %v801 = vpack.c.b16 %v789, %v788
    %v802 = vpack.c.b16 %v791, %v790
    %v803 = vpack.c.b16 %v793, %v792
    %v804 = vpack.c.b16 %v795, %v794
    %v805 = vpack.c.b16 %v797, %v796
    %814 = vmatpush.bf16.msra.mxu0 %v805
    %815 = vmatpush.bf16.msra.mxu0 %v804
    %816 = vmatpush.bf16.msra.mxu0 %v803
    %817 = vmatpush.bf16.msra.mxu0 %v802
    %818 = vmatpush.bf16.msra.mxu0 %v801
    %819 = vmatpush.bf16.msra.mxu0 %v800
    %820 = vmatpush.bf16.msra.mxu0 %v799
    %821 = vmatpush.bf16.msra.mxu0 %v798
    %822 = vmatmul.bf16.gmra.mxu0 %v748
    %v823 = vpop.f32.mrf.mxu0
    %v824 = vadd.f32 %v765, %v823
    %v825 = vpop.f32.mrf.mxu0
    %826 = vdwg.mxu0
    %v827 = vmax.f32 %v824, 0.0
    %v828 = vpack.c.bf16 %v827, %v827
    %v829 = vld [vmem:[#allocation16] sm:$0xff]
    %v830 = vld [vmem:[#allocation16 + $0x8] sm:$0xff]
    %v831 = vld [vmem:[#allocation16 + $0x10] sm:$0xff]
    %v832 = vld [vmem:[#allocation16 + $0x18] sm:$0xff]
    %v833 = vld [vmem:[#allocation16 + $0x20] sm:$0xff]
    %v834 = vld [vmem:[#allocation16 + $0x28] sm:$0xff]
    %v835 = vld [vmem:[#allocation16 + $0x30] sm:$0xff]
    %v836 = vld [vmem:[#allocation16 + $0x38] sm:$0xff]
    %v837 = vld [vmem:[#allocation16 + $0x40] sm:$0xff]
    %v838 = vld [vmem:[#allocation16 + $0x48] sm:$0xff]
    %v839 = vld [vmem:[#allocation16 + $0x50] sm:$0xff]
    %v840 = vld [vmem:[#allocation16 + $0x58] sm:$0xff]
    %v841 = vld [vmem:[#allocation16 + $0x60] sm:$0xff]
    %v842 = vld [vmem:[#allocation16 + $0x68] sm:$0xff]
    %v843 = vld [vmem:[#allocation16 + $0x70] sm:$0xff]
    %v844 = vld [vmem:[#allocation16 + $0x78] sm:$0xff]
    %s845 = scalar_lea.vmem [#allocation17], 7
    %v846 = vld [vmem:[%s845] ss:$8 sm:$0x3]
    %v848 = vperm.slane %v846, 0
    %v849 = vperm.slane %v846, 1
    %v868 = vunpack.c.l.b16 %v829
    %v869 = vunpack.c.h.b16 %v829
    %v870 = vunpack.c.l.b16 %v830
    %v871 = vunpack.c.h.b16 %v830
    %v872 = vunpack.c.l.b16 %v831
    %v873 = vunpack.c.h.b16 %v831
    %v874 = vunpack.c.l.b16 %v832
    %v875 = vunpack.c.h.b16 %v832
    %v876 = vunpack.c.l.b16 %v833
    %v877 = vunpack.c.h.b16 %v833
    %v878 = vunpack.c.l.b16 %v834
    %v879 = vunpack.c.h.b16 %v834
    %v880 = vunpack.c.l.b16 %v835
    %v881 = vunpack.c.h.b16 %v835
    %v882 = vunpack.c.l.b16 %v836
    %v883 = vunpack.c.h.b16 %v836
    %v884 = vunpack.c.l.b16 %v837
    %v885 = vunpack.c.h.b16 %v837
    %v886 = vunpack.c.l.b16 %v838
    %v887 = vunpack.c.h.b16 %v838
    %v888 = vunpack.c.l.b16 %v839
    %v889 = vunpack.c.h.b16 %v839
    %v890 = vunpack.c.l.b16 %v840
    %v891 = vunpack.c.h.b16 %v840
    %v892 = vunpack.c.l.b16 %v841
    %v893 = vunpack.c.h.b16 %v841
    %v894 = vunpack.c.l.b16 %v842
    %v895 = vunpack.c.h.b16 %v842
    %v896 = vunpack.c.l.b16 %v843
    %v897 = vunpack.c.h.b16 %v843
    %v898 = vunpack.c.l.b16 %v844
    %v899 = vunpack.c.h.b16 %v844
    %v900 = vpack.c.b16 %v870, %v868
    %v901 = vpack.c.b16 %v871, %v869
    %v902 = vpack.c.b16 %v874, %v872
    %v903 = vpack.c.b16 %v875, %v873
    %v904 = vpack.c.b16 %v878, %v876
    %v905 = vpack.c.b16 %v879, %v877
    %v906 = vpack.c.b16 %v882, %v880
    %v907 = vpack.c.b16 %v883, %v881
    %v908 = vpack.c.b16 %v886, %v884
    %v909 = vpack.c.b16 %v887, %v885
    %v910 = vpack.c.b16 %v890, %v888
    %v911 = vpack.c.b16 %v891, %v889
    %v912 = vpack.c.b16 %v894, %v892
    %v913 = vpack.c.b16 %v895, %v893
    %v914 = vpack.c.b16 %v898, %v896
    %v915 = vpack.c.b16 %v899, %v897
    %932 = vmatpush.bf16.msra.mxu0 %v914
    %933 = vmatpush.bf16.msra.mxu0 %v912
    %934 = vmatpush.bf16.msra.mxu0 %v910
    %935 = vmatpush.bf16.msra.mxu0 %v908
    %936 = vmatpush.bf16.msra.mxu0 %v906
    %937 = vmatpush.bf16.msra.mxu0 %v904
    %938 = vmatpush.bf16.msra.mxu0 %v902
    %939 = vmatpush.bf16.msra.mxu0 %v900
    %940 = vmatmul.bf16.gmra.mxu0 %v828
    %v941 = vpop.f32.mrf.mxu0
    %v942 = vadd.f32 %v848, %v941
    %v943 = vpop.f32.mrf.mxu0
    %944 = vdwg.mxu0
    %945 = vmatpush.bf16.msra.mxu0 %v915
    %946 = vmatpush.bf16.msra.mxu0 %v913
    %947 = vmatpush.bf16.msra.mxu0 %v911
    %948 = vmatpush.bf16.msra.mxu0 %v909
    %949 = vmatpush.bf16.msra.mxu0 %v907
    %950 = vmatpush.bf16.msra.mxu0 %v905
    %951 = vmatpush.bf16.msra.mxu0 %v903
    %952 = vmatpush.bf16.msra.mxu0 %v901
    %953 = vmatmul.bf16.gmra.mxu0 %v828
    %v954 = vpop.f32.mrf.mxu0
    %v955 = vadd.f32 %v849, %v954
    %v956 = vpop.f32.mrf.mxu0
    %957 = vdwg.mxu0
    %v958 = vpack.c.bf16 %v955, %v942
    %959 = vst [vmem:[#allocation19] sm:$0xff] %v958
    // Predicated region
    $region82: #{tpu_custom_call.1} parent=1 // pred_check
      _
    $region83: #{tpu_custom_call.1} parent=1 // pred_check_branch
      %961 = sbr.rel (0) target = $region85
    $region84: #{tpu_custom_call.1} parent=1 // pred_region
      %963 = vsyncadd [#allocation4], 0
      %s965 = sshll.u32 [#allocation19], 4
      %s966 = int_to_ptr.vmem [resolvable:$true] %s965
      %s967 = sshll.u32 %s10, 4
      %s968 = int_to_ptr.hbm [resolvable:$true] %s967
      %970 = dma.vmem_to_hbm [thread:$0]  %s966, 128, %s968, [#allocation4]
    $region85: #{tpu_custom_call.1} parent=1 // pred_fallthru
      _
    // Predicated region
    $region86: #{tpu_custom_call.1} parent=1 // pred_check
      _
    $region87: #{tpu_custom_call.1} parent=1 // pred_check_branch
      %972 = sbr.rel (0) target = $region89
    $region88: #{tpu_custom_call.1} parent=1 // pred_region
      %974 = dma.done [#allocation4], 128
    $region89: #{tpu_custom_call.1} parent=1 // pred_fallthru
      _
    %975 = vsyncpa [#allocation3], 1
    %976 = vsyncpa [#allocation6], 1
    %977 = vsyncpa [#allocation9], 1
    %978 = vsyncpa [#allocation12], 1
    %979 = vsyncpa [#allocation15], 1
    %980 = vsyncpa [#allocation18], 1
    %981 = vsyncpa [#allocation4], 1

</llo_original>
